<compile_context>
chip_gen: v6e
topology: v6e:2x2x1
jax: 0.10.0
libtpu: 0.0.40
codegen_flags: <defaults>
</compile_context>

<pallas_src>
import jax
import jax.numpy as jnp
from jax.experimental import pallas as pl
from jax.experimental.pallas import tpu as pltpu


def scse_kernel(x_ref, w1_ref, b1_ref, w2_ref, b2_ref, wc_ref, o_ref, pooled_ref):
    # x_ref block: (Bt, C, HW); pooled_ref scratch: (C, Bt) f32
    Bt = x_ref.shape[0]
    HW = x_ref.shape[2]
    inv_hw = 1.0 / HW

    # ---- global average pool: gather one (C, 1) column per sub-batch ----
    for b in range(Bt):  # Bt is a small static int -> unrolled at trace time
        xb = x_ref[b].astype(jnp.float32)                               # (C, HW)
        pooled_ref[:, b:b + 1] = jnp.sum(xb, axis=-1, keepdims=True) * inv_hw

    pooled = pooled_ref[...]                                            # (C, Bt)

    # ---- channel excitation (MLP batched over the Bt columns) ----
    h = jnp.dot(w1_ref[...], pooled,
                preferred_element_type=jnp.float32) + b1_ref[...]       # (Cr, Bt)
    h = jnp.maximum(h, 0.0)
    chn = jax.nn.sigmoid(
        jnp.dot(w2_ref[...], h,
                preferred_element_type=jnp.float32) + b2_ref[...])      # (C, Bt)

    # ---- spatial excitation + recalibration, per sub-batch (2-D, lane-dense store) ----
    for b in range(Bt):
        xb = x_ref[b]                                                   # (C, HW)
        spa = jax.nn.sigmoid(
            jnp.dot(wc_ref[...], xb,
                    preferred_element_type=jnp.float32))                # (1, HW)
        o_ref[b] = (xb * chn[:, b:b + 1] * spa).astype(o_ref.dtype)


def _pick_bt(B, per_batch_bytes, target_bytes=4 * 1024 * 1024, max_bt=8):
    """Largest divisor of B with Bt <= max_bt, block <= target, and >= 2 grid steps."""
    bt = 1
    for cand in range(1, min(B, max_bt) + 1):
        if B % cand:
            continue
        if cand > 1 and cand * per_batch_bytes > target_bytes:
            continue
        if B >= 2 and (B // cand) < 2:
            continue  # keep >= 2 grid steps so v7x's second TensorCore has work
        bt = cand
    return bt


def scse_block(x, w1, b1, w2, b2, wc):
    """x: (B, C, H, W). Returns (B, C, H, W). Weights as in the PyTorch module."""
    B, C, H, W = x.shape
    HW = H * W
    Cr = w1.shape[0]
    x2 = x.reshape(B, C, HW)

    itemsize = jnp.dtype(x.dtype).itemsize
    per_batch_bytes = C * HW * itemsize
    bt = _pick_bt(B, per_batch_bytes)
    grid = (B // bt,)

    # VMEM budget: double-buffered input + output blocks + params + margin,
    # clamped so it is safe on v7x (64 MiB physical VMEM).
    block_bytes = bt * per_batch_bytes
    param_bytes = 4 * (w1.size + b1.size + w2.size + b2.size + wc.size)
    vmem_needed = 4 * block_bytes + 2 * param_bytes + (2 << 20)
    vmem_limit = int(max(16 << 20, min(vmem_needed, 48 << 20)))
    # TODO(synk): if a single (1, C, HW) block ever exceeds the v7x budget, split HW
    # across a second grid axis with a two-pass (pool+gate, then scale) structure.

    out = pl.pallas_call(
        scse_kernel,
        out_shape=jax.ShapeDtypeStruct((B, C, HW), x.dtype),
        grid_spec=pltpu.PrefetchScalarGridSpec(
            num_scalar_prefetch=0,
            grid=grid,
            in_specs=[
                pl.BlockSpec((bt, C, HW), lambda i: (i, 0, 0)),   # x
                pl.BlockSpec((Cr, C),     lambda i: (0, 0)),      # W1 (C -> C//r)
                pl.BlockSpec((Cr, 1),     lambda i: (0, 0)),      # b1
                pl.BlockSpec((C, Cr),     lambda i: (0, 0)),      # W2 (C//r -> C)
                pl.BlockSpec((C, 1),      lambda i: (0, 0)),      # b2
                pl.BlockSpec((1, C),      lambda i: (0, 0)),      # 1x1 conv weight
            ],
            out_specs=pl.BlockSpec((bt, C, HW), lambda i: (i, 0, 0)),
            scratch_shapes=[pltpu.VMEM((C, bt), jnp.float32)],    # pooled columns
        ),
        compiler_params=pltpu.CompilerParams(
            dimension_semantics=("parallel",),
            vmem_limit_bytes=vmem_limit,
        ),
    )(x2, w1, b1, w2, b2, wc)
    return out.reshape(B, C, H, W)


def scse_reference(x, w1, b1, w2, b2, wc):
    """Pure-JAX reference mirroring the PyTorch forward."""
    pooled = x.mean(axis=(2, 3))                                       # (B, C)
    h = jnp.maximum(pooled @ w1.T + b1[:, 0], 0.0)                     # (B, Cr)
    chn = jax.nn.sigmoid(h @ w2.T + b2[:, 0])                          # (B, C)
    spa = jax.nn.sigmoid(jnp.einsum('bchw,oc->bohw', x, wc))           # (B, 1, H, W)
    return x * chn[:, :, None, None] * spa


if __name__ == "__main__":
    B, C, H, W = 4, 32, 16, 16
    reduction = 16
    Cr = max(C // reduction, 1)

    key = jax.random.PRNGKey(0)
    kx, k1, k2, k3, k4, k5 = jax.random.split(key, 6)

    x  = jax.random.normal(kx, (B, C, H, W), dtype=jnp.float32)
    # deterministic synthetic parameters (shapes match nn.Linear / nn.Conv2d weights)
    w1 = jax.random.normal(k1, (Cr, C), dtype=jnp.float32) * 0.2   # Linear(C, C//r).weight
    b1 = jax.random.normal(k2, (Cr, 1), dtype=jnp.float32) * 0.1   # Linear(C, C//r).bias
    w2 = jax.random.normal(k3, (C, Cr), dtype=jnp.float32) * 0.2   # Linear(C//r, C).weight
    b2 = jax.random.normal(k4, (C, 1), dtype=jnp.float32) * 0.1    # Linear(C//r, C).bias
    wc = jax.random.normal(k5, (1, C), dtype=jnp.float32) * 0.2    # Conv2d(C,1,1,bias=False).weight

    out = scse_block(x, w1, b1, w2, b2, wc)
    jax.block_until_ready(out)

    ref = scse_reference(x, w1, b1, w2, b2, wc)
    assert out.shape == (B, C, H, W)
    assert jnp.allclose(out, ref, atol=1e-5, rtol=1e-5), "mismatch vs reference"

    print("KERNEL_OK")
</pallas_src>

<mosaic_0001>
module attributes {stable_mosaic.version = 11 : i64} {
  func.func @scse_kernel(%arg0: i32, %arg1: memref<2x32x256xf32, #tpu.memory_space<vmem>>, %arg2: memref<2x32xf32, #tpu.memory_space<vmem>>, %arg3: memref<2x1xf32, #tpu.memory_space<vmem>>, %arg4: memref<32x2xf32, #tpu.memory_space<vmem>>, %arg5: memref<32x1xf32, #tpu.memory_space<vmem>>, %arg6: memref<1x32xf32, #tpu.memory_space<vmem>>, %arg7: memref<2x32x256xf32, #tpu.memory_space<vmem>>, %arg8: memref<32x2xf32, #tpu.memory_space<vmem>>) attributes {dimension_semantics = [#tpu.dimension_semantics<parallel>], iteration_bounds = array<i64: 2>, scalar_prefetch = 0 : i64, scratch_operands = 1 : i64, tpu.core_type = #tpu.core_type<tc>, window_params = [{transform_indices = @transform_0, window_bounds = array<i64: 2, 32, 256>}, {pipeline_mode = #tpu.pipeline_mode<synchronous>, transform_indices = @transform_1, window_bounds = array<i64: 2, 32>}, {pipeline_mode = #tpu.pipeline_mode<synchronous>, transform_indices = @transform_2, window_bounds = array<i64: 2, 1>}, {pipeline_mode = #tpu.pipeline_mode<synchronous>, transform_indices = @transform_3, window_bounds = array<i64: 32, 2>}, {pipeline_mode = #tpu.pipeline_mode<synchronous>, transform_indices = @transform_4, window_bounds = array<i64: 32, 1>}, {pipeline_mode = #tpu.pipeline_mode<synchronous>, transform_indices = @transform_5, window_bounds = array<i64: 1, 32>}, {transform_indices = @transform_6, window_bounds = array<i64: 2, 32, 256>}]} {
    %c0 = arith.constant 0 : index
    %c0_0 = arith.constant 0 : index
    %c0_1 = arith.constant 0 : index
    %0 = vector.load %arg1[%c0, %c0_0, %c0_1] : memref<2x32x256xf32, #tpu.memory_space<vmem>>, vector<1x32x256xf32>
    %1 = vector.shape_cast %0 : vector<1x32x256xf32> to vector<32x256xf32>
    %cst = arith.constant dense<0.000000e+00> : vector<32xf32>
    %2 = vector.multi_reduction <add>, %1, %cst [1] : vector<32x256xf32> to vector<32xf32>
    %3 = vector.shape_cast %2 : vector<32xf32> to vector<32x1xf32>
    %cst_2 = arith.constant 3.906250e-03 : f32
    %4 = vector.broadcast %cst_2 : f32 to vector<32x1xf32>
    %5 = arith.mulf %3, %4 : vector<32x1xf32>
    %c0_3 = arith.constant 0 : index
    %c0_4 = arith.constant 0 : index
    %6 = vector.load %arg8[%c0_3, %c0_4] : memref<32x2xf32, #tpu.memory_space<vmem>>, vector<32x1xf32>
    tpu.vector_store %arg8[%c0_3, %c0_4], %5 {strides = array<i32>} : memref<32x2xf32, #tpu.memory_space<vmem>>, vector<32x1xf32>,
    %c1 = arith.constant 1 : index
    %c0_5 = arith.constant 0 : index
    %c0_6 = arith.constant 0 : index
    %7 = vector.load %arg1[%c1, %c0_5, %c0_6] : memref<2x32x256xf32, #tpu.memory_space<vmem>>, vector<1x32x256xf32>
    %8 = vector.shape_cast %7 : vector<1x32x256xf32> to vector<32x256xf32>
    %cst_7 = arith.constant dense<0.000000e+00> : vector<32xf32>
    %9 = vector.multi_reduction <add>, %8, %cst_7 [1] : vector<32x256xf32> to vector<32xf32>
    %10 = vector.shape_cast %9 : vector<32xf32> to vector<32x1xf32>
    %cst_8 = arith.constant 3.906250e-03 : f32
    %11 = vector.broadcast %cst_8 : f32 to vector<32x1xf32>
    %12 = arith.mulf %10, %11 : vector<32x1xf32>
    %c0_9 = arith.constant 0 : index
    %c1_10 = arith.constant 1 : index
    %13 = vector.load %arg8[%c0_9, %c1_10] : memref<32x2xf32, #tpu.memory_space<vmem>>, vector<32x1xf32>
    tpu.vector_store %arg8[%c0_9, %c1_10], %12 {strides = array<i32>} : memref<32x2xf32, #tpu.memory_space<vmem>>, vector<32x1xf32>,
    %c0_11 = arith.constant 0 : index
    %c0_12 = arith.constant 0 : index
    %14 = vector.load %arg8[%c0_11, %c0_12] : memref<32x2xf32, #tpu.memory_space<vmem>>, vector<32x2xf32>
    %c0_13 = arith.constant 0 : index
    %c0_14 = arith.constant 0 : index
    %15 = vector.load %arg2[%c0_13, %c0_14] : memref<2x32xf32, #tpu.memory_space<vmem>>, vector<2x32xf32>
    %cst_15 = arith.constant dense<0.000000e+00> : vector<2x2xf32>
    %16 = tpu.matmul %15, %14, %cst_15 {dimension_numbers = #tpu.dot_dimension_numbers<[1], [0], [0], [1], [0, 0, 1, 1], [], []>} : vector<2x32xf32>, vector<32x2xf32>, vector<2x2xf32> -> vector<2x2xf32>
    %c0_16 = arith.constant 0 : index
    %c0_17 = arith.constant 0 : index
    %17 = vector.load %arg3[%c0_16, %c0_17] : memref<2x1xf32, #tpu.memory_space<vmem>>, vector<2x1xf32>
    %18 = vector.broadcast %17 : vector<2x1xf32> to vector<2x2xf32>
    %19 = arith.addf %16, %18 : vector<2x2xf32>
    %cst_18 = arith.constant 0.000000e+00 : f32
    %20 = vector.broadcast %cst_18 : f32 to vector<2x2xf32>
    %21 = arith.maximumf %19, %20 : vector<2x2xf32>
    %c0_19 = arith.constant 0 : index
    %c0_20 = arith.constant 0 : index
    %22 = vector.load %arg4[%c0_19, %c0_20] : memref<32x2xf32, #tpu.memory_space<vmem>>, vector<32x2xf32>
    %cst_21 = arith.constant dense<0.000000e+00> : vector<32x2xf32>
    %23 = tpu.matmul %22, %21, %cst_21 {dimension_numbers = #tpu.dot_dimension_numbers<[1], [0], [0], [1], [0, 0, 1, 1], [], []>} : vector<32x2xf32>, vector<2x2xf32>, vector<32x2xf32> -> vector<32x2xf32>
    %c0_22 = arith.constant 0 : index
    %c0_23 = arith.constant 0 : index
    %24 = vector.load %arg5[%c0_22, %c0_23] : memref<32x1xf32, #tpu.memory_space<vmem>>, vector<32x1xf32>
    %25 = vector.broadcast %24 : vector<32x1xf32> to vector<32x2xf32>
    %26 = arith.addf %23, %25 : vector<32x2xf32>
    %27 = arith.negf %26 : vector<32x2xf32>
    %28 = math.exp %27 : vector<32x2xf32>
    %cst_24 = arith.constant 1.000000e+00 : f32
    %29 = vector.broadcast %cst_24 : f32 to vector<32x2xf32>
    %30 = arith.addf %29, %28 : vector<32x2xf32>
    %31 = arith.divf %29, %30 : vector<32x2xf32>
    %c0_25 = arith.constant 0 : index
    %c0_26 = arith.constant 0 : index
    %c0_27 = arith.constant 0 : index
    %32 = vector.load %arg1[%c0_25, %c0_26, %c0_27] : memref<2x32x256xf32, #tpu.memory_space<vmem>>, vector<1x32x256xf32>
    %33 = vector.shape_cast %32 : vector<1x32x256xf32> to vector<32x256xf32>
    %c0_28 = arith.constant 0 : index
    %c0_29 = arith.constant 0 : index
    %34 = vector.load %arg6[%c0_28, %c0_29] : memref<1x32xf32, #tpu.memory_space<vmem>>, vector<1x32xf32>
    %cst_30 = arith.constant dense<0.000000e+00> : vector<1x256xf32>
    %35 = tpu.matmul %34, %33, %cst_30 {dimension_numbers = #tpu.dot_dimension_numbers<[1], [0], [0], [1], [0, 0, 1, 1], [], []>} : vector<1x32xf32>, vector<32x256xf32>, vector<1x256xf32> -> vector<1x256xf32>
    %36 = arith.negf %35 : vector<1x256xf32>
    %37 = math.exp %36 : vector<1x256xf32>
    %cst_31 = arith.constant 1.000000e+00 : f32
    %38 = vector.broadcast %cst_31 : f32 to vector<1x256xf32>
    %39 = arith.addf %38, %37 : vector<1x256xf32>
    %40 = arith.divf %38, %39 : vector<1x256xf32>
    %41 = vector.extract_strided_slice %31 {offsets = [0, 0], sizes = [32, 1], strides = [1, 1]} : vector<32x2xf32> to vector<32x1xf32>
    %42 = vector.broadcast %41 : vector<32x1xf32> to vector<32x256xf32>
    %43 = arith.mulf %33, %42 : vector<32x256xf32>
    %44 = vector.broadcast %40 : vector<1x256xf32> to vector<32x256xf32>
    %45 = arith.mulf %43, %44 : vector<32x256xf32>
    %c0_32 = arith.constant 0 : index
    %c0_33 = arith.constant 0 : index
    %c0_34 = arith.constant 0 : index
    %46 = vector.load %arg7[%c0_32, %c0_33, %c0_34] : memref<2x32x256xf32, #tpu.memory_space<vmem>>, vector<1x32x256xf32>
    %47 = vector.shape_cast %46 : vector<1x32x256xf32> to vector<32x256xf32>
    %48 = vector.shape_cast %45 : vector<32x256xf32> to vector<1x32x256xf32>
    tpu.vector_store %arg7[%c0_32, %c0_33, %c0_34], %48 {strides = array<i32>} : memref<2x32x256xf32, #tpu.memory_space<vmem>>, vector<1x32x256xf32>,
    %c1_35 = arith.constant 1 : index
    %c0_36 = arith.constant 0 : index
    %c0_37 = arith.constant 0 : index
    %49 = vector.load %arg1[%c1_35, %c0_36, %c0_37] : memref<2x32x256xf32, #tpu.memory_space<vmem>>, vector<1x32x256xf32>
    %50 = vector.shape_cast %49 : vector<1x32x256xf32> to vector<32x256xf32>
    %c0_38 = arith.constant 0 : index
    %c0_39 = arith.constant 0 : index
    %51 = vector.load %arg6[%c0_38, %c0_39] : memref<1x32xf32, #tpu.memory_space<vmem>>, vector<1x32xf32>
    %cst_40 = arith.constant dense<0.000000e+00> : vector<1x256xf32>
    %52 = tpu.matmul %51, %50, %cst_40 {dimension_numbers = #tpu.dot_dimension_numbers<[1], [0], [0], [1], [0, 0, 1, 1], [], []>} : vector<1x32xf32>, vector<32x256xf32>, vector<1x256xf32> -> vector<1x256xf32>
    %53 = arith.negf %52 : vector<1x256xf32>
    %54 = math.exp %53 : vector<1x256xf32>
    %cst_41 = arith.constant 1.000000e+00 : f32
    %55 = vector.broadcast %cst_41 : f32 to vector<1x256xf32>
    %56 = arith.addf %55, %54 : vector<1x256xf32>
    %57 = arith.divf %55, %56 : vector<1x256xf32>
    %58 = vector.extract_strided_slice %31 {offsets = [0, 1], sizes = [32, 1], strides = [1, 1]} : vector<32x2xf32> to vector<32x1xf32>
    %59 = vector.broadcast %58 : vector<32x1xf32> to vector<32x256xf32>
    %60 = arith.mulf %50, %59 : vector<32x256xf32>
    %61 = vector.broadcast %57 : vector<1x256xf32> to vector<32x256xf32>
    %62 = arith.mulf %60, %61 : vector<32x256xf32>
    %c1_42 = arith.constant 1 : index
    %c0_43 = arith.constant 0 : index
    %c0_44 = arith.constant 0 : index
    %63 = vector.load %arg7[%c1_42, %c0_43, %c0_44] : memref<2x32x256xf32, #tpu.memory_space<vmem>>, vector<1x32x256xf32>
    %64 = vector.shape_cast %63 : vector<1x32x256xf32> to vector<32x256xf32>
    %65 = vector.shape_cast %62 : vector<32x256xf32> to vector<1x32x256xf32>
    tpu.vector_store %arg7[%c1_42, %c0_43, %c0_44], %65 {strides = array<i32>} : memref<2x32x256xf32, #tpu.memory_space<vmem>>, vector<1x32x256xf32>,
    return
  }
  func.func @transform_0(%arg0: i32) -> (i32, i32, i32) {
    %c0_i32 = arith.constant 0 : i32
    %c0_i32_0 = arith.constant 0 : i32
    %c0_i32_1 = arith.constant 0 : i32
    return %arg0, %c0_i32, %c0_i32_0 : i32, i32, i32
  }
  func.func @transform_1(%arg0: i32) -> (i32, i32) {
    %c0_i32 = arith.constant 0 : i32
    %c0_i32_0 = arith.constant 0 : i32
    %c0_i32_1 = arith.constant 0 : i32
    return %c0_i32, %c0_i32_0 : i32, i32
  }
  func.func @transform_2(%arg0: i32) -> (i32, i32) {
    %c0_i32 = arith.constant 0 : i32
    %c0_i32_0 = arith.constant 0 : i32
    %c0_i32_1 = arith.constant 0 : i32
    return %c0_i32, %c0_i32_0 : i32, i32
  }
  func.func @transform_3(%arg0: i32) -> (i32, i32) {
    %c0_i32 = arith.constant 0 : i32
    %c0_i32_0 = arith.constant 0 : i32
    %c0_i32_1 = arith.constant 0 : i32
    return %c0_i32, %c0_i32_0 : i32, i32
  }
  func.func @transform_4(%arg0: i32) -> (i32, i32) {
    %c0_i32 = arith.constant 0 : i32
    %c0_i32_0 = arith.constant 0 : i32
    %c0_i32_1 = arith.constant 0 : i32
    return %c0_i32, %c0_i32_0 : i32, i32
  }
  func.func @transform_5(%arg0: i32) -> (i32, i32) {
    %c0_i32 = arith.constant 0 : i32
    %c0_i32_0 = arith.constant 0 : i32
    %c0_i32_1 = arith.constant 0 : i32
    return %c0_i32, %c0_i32_0 : i32, i32
  }
  func.func @transform_6(%arg0: i32) -> (i32, i32, i32) {
    %c0_i32 = arith.constant 0 : i32
    %c0_i32_0 = arith.constant 0 : i32
    %c0_i32_1 = arith.constant 0 : i32
    return %arg0, %c0_i32, %c0_i32_0 : i32, i32, i32
  }
}

</mosaic_0001>

<llo_original>
// kernel: tpu_custom_call.1
$region0: #{tpu_custom_call.1}
  #allocation0 [shape = 'u32[]', space=smem, size = 0x4, offset = 0x4, fixed_abs, tag = 'smem constant byte address 0x4 - core index']
  #allocation1 [shape = 'u32[144,128]{1,0:T(1,128)}', space=vmem, size = 0x12000, scoped, tag = 'internal scratch']
  #allocation2 [shape = 'f32[32,2]{1,0:T(8,128)}', space=vmem, size = 0x4000, scoped, tag = 'scratch operand']
  %s0 = inlined_call_operand.hbm [shape: f32[4,32,256], index: 0, kind: input, shape index: {}]
  %s1 = inlined_call_operand.vmem [shape: f32[2,32], index: 1, kind: input, shape index: {}]
  %s2 = inlined_call_operand.vmem [shape: f32[2,1], index: 2, kind: input, shape index: {}]
  %s3 = inlined_call_operand.vmem [shape: f32[32,2], index: 3, kind: input, shape index: {}]
  %s4 = inlined_call_operand.vmem [shape: f32[32,1], index: 4, kind: input, shape index: {}]
  %s5 = inlined_call_operand.vmem [shape: f32[1,32], index: 5, kind: input, shape index: {}]
  %s6 = inlined_call_operand.hbm [shape: f32[4,32,256], index: 6, kind: output, shape index: {}]
  %s7 = sld [smem:[#allocation0]]
  $region61: #{tpu_custom_call.1} parent=0
    _
  %s9 = ssub.s32 1, %s7
  %s10 = scalar_select 0, %s9, %s7
  $region1: #{tpu_custom_call.1} parent=0
    #allocation3 [shape = 'u8[131072]{0}', space=vmem, size = 0x20000, scoped, tag = 'input window, operand 0']
    #allocation4 [shape = 's32[2]{0}', space=sflag, size = 0x8, scoped, tag = 'scoped memory for tpu_custom_call.1']
    #allocation5 [shape = 's32[2]{0}', space=sflag, size = 0x8, scoped, tag = 'scoped memory for tpu_custom_call.1']
    #allocation6 [shape = 'u8[131072]{0}', space=vmem, size = 0x20000, scoped, tag = 'output window, operand 0']
    %11 = vsyncpa [#allocation4], 0
    %s12 = scalar_lea.sflag [#allocation4], 1
    %13 = vsyncpa %s12, 0
    %14 = vsyncpa [#allocation5], 0
    %s15 = scalar_lea.sflag [#allocation5], 1
    %16 = vsyncpa %s15, 0
    loop: start=0, step=1, limit=4
    $region2: #{tpu_custom_call.1} parent=1 // loop_pre_header
      _
    $region3: #{tpu_custom_call.1} parent=1 // loop_header
      %s18 = sphi 0, %s22
      %p19 = scmp.ge.s32.totalorder %s18, 4
      %s28 = sphi 0, %s30
      %s31 = sphi 0, %s28
      %s32 = sphi 0, %s31
      %s48 = sphi 0, %s32
      %s52 = sphi 0, %s52
      %s54 = sphi 0, %s52
      %s55 = sphi 0, %s54
      %s69 = sphi 0, %s55
      %s73 = sphi 0, %s73
      %s75 = sphi 0, %s73
      %s76 = sphi 0, %s75
      %s90 = sphi 0, %s76
      %s94 = sphi 0, %s94
      %s96 = sphi 0, %s94
      %s97 = sphi 0, %s96
      %s111 = sphi 0, %s97
      %s115 = sphi 0, %s115
      %s117 = sphi 0, %s115
      %s118 = sphi 0, %s117
      %s132 = sphi 0, %s118
      %s136 = sphi 0, %s136
      %s138 = sphi 0, %s136
      %s139 = sphi 0, %s138
      %s153 = sphi 0, %s139
      %s159 = sphi 0, %s161
      %s162 = sphi 0, %s159
      %s163 = sphi 0, %s162
      %s179 = sphi 0, %s163
    $region4: #{tpu_custom_call.1} parent=1 // loop_header_branch
      %21 = sbr.rel (%p19) target = $region8
    $region5: #{tpu_custom_call.1} parent=1 // loop_body
      %s23 = ssub.s32 %s18, 1
      %s24 = ssub.s32 %s18, 2
      %s25 = sadd.s32 %s18, 1
      %s26 = ssub.s32 %s18, %s25
      %p27 = scmp.eq.s32.totalorder %s26, 0
      %s29 = sadd.s32 %s28, 1
      %s30 = scalar_select %p27, %s28, %s29
      %p33 = pneg %p27
      %p34 = scmp.eq.s32.totalorder %s18, 1
      %p35 = por %p33, %p34
      %p36 = scmp.ne.s32.totalorder %s28, %s31
      %p37 = scmp.eq.s32.totalorder %s18, 0
      %p38 = por %p36, %p37
      %p39 = scmp.ne.s32.totalorder %s28, %s31
      %p40 = scmp.eq.s32.totalorder %s23, 1
      %p41 = por %p39, %p40
      %p42 = scmp.ne.s32.totalorder %s31, %s32
      %p43 = scmp.eq.s32.totalorder %s23, 0
      %p44 = por %p42, %p43
      %p45 = scmp.ne.s32.totalorder %s31, %s32
      %p46 = scmp.eq.s32.totalorder %s24, 1
      %p47 = por %p45, %p46
      %p49 = scmp.ne.s32.totalorder %s32, %s48
      %p50 = scmp.eq.s32.totalorder %s24, 0
      %p51 = por %p49, %p50
      %s53 = sadd.s32 %s52, 1
      %p56 = scmp.eq.s32.totalorder %s18, 1
      %p57 = scmp.ne.s32.totalorder %s52, %s54
      %p58 = scmp.eq.s32.totalorder %s18, 0
      %p59 = por %p57, %p58
      %p60 = scmp.ne.s32.totalorder %s52, %s54
      %p61 = scmp.eq.s32.totalorder %s23, 1
      %p62 = por %p60, %p61
      %p63 = scmp.ne.s32.totalorder %s54, %s55
      %p64 = scmp.eq.s32.totalorder %s23, 0
      %p65 = por %p63, %p64
      %p66 = scmp.ne.s32.totalorder %s54, %s55
      %p67 = scmp.eq.s32.totalorder %s24, 1
      %p68 = por %p66, %p67
      %p70 = scmp.ne.s32.totalorder %s55, %s69
      %p71 = scmp.eq.s32.totalorder %s24, 0
      %p72 = por %p70, %p71
      %s74 = sadd.s32 %s73, 1
      %p77 = scmp.eq.s32.totalorder %s18, 1
      %p78 = scmp.ne.s32.totalorder %s73, %s75
      %p79 = scmp.eq.s32.totalorder %s18, 0
      %p80 = por %p78, %p79
      %p81 = scmp.ne.s32.totalorder %s73, %s75
      %p82 = scmp.eq.s32.totalorder %s23, 1
      %p83 = por %p81, %p82
      %p84 = scmp.ne.s32.totalorder %s75, %s76
      %p85 = scmp.eq.s32.totalorder %s23, 0
      %p86 = por %p84, %p85
      %p87 = scmp.ne.s32.totalorder %s75, %s76
      %p88 = scmp.eq.s32.totalorder %s24, 1
      %p89 = por %p87, %p88
      %p91 = scmp.ne.s32.totalorder %s76, %s90
      %p92 = scmp.eq.s32.totalorder %s24, 0
      %p93 = por %p91, %p92
      %s95 = sadd.s32 %s94, 1
      %p98 = scmp.eq.s32.totalorder %s18, 1
      %p99 = scmp.ne.s32.totalorder %s94, %s96
      %p100 = scmp.eq.s32.totalorder %s18, 0
      %p101 = por %p99, %p100
      %p102 = scmp.ne.s32.totalorder %s94, %s96
      %p103 = scmp.eq.s32.totalorder %s23, 1
      %p104 = por %p102, %p103
      %p105 = scmp.ne.s32.totalorder %s96, %s97
      %p106 = scmp.eq.s32.totalorder %s23, 0
      %p107 = por %p105, %p106
      %p108 = scmp.ne.s32.totalorder %s96, %s97
      %p109 = scmp.eq.s32.totalorder %s24, 1
      %p110 = por %p108, %p109
      %p112 = scmp.ne.s32.totalorder %s97, %s111
      %p113 = scmp.eq.s32.totalorder %s24, 0
      %p114 = por %p112, %p113
      %s116 = sadd.s32 %s115, 1
      %p119 = scmp.eq.s32.totalorder %s18, 1
      %p120 = scmp.ne.s32.totalorder %s115, %s117
      %p121 = scmp.eq.s32.totalorder %s18, 0
      %p122 = por %p120, %p121
      %p123 = scmp.ne.s32.totalorder %s115, %s117
      %p124 = scmp.eq.s32.totalorder %s23, 1
      %p125 = por %p123, %p124
      %p126 = scmp.ne.s32.totalorder %s117, %s118
      %p127 = scmp.eq.s32.totalorder %s23, 0
      %p128 = por %p126, %p127
      %p129 = scmp.ne.s32.totalorder %s117, %s118
      %p130 = scmp.eq.s32.totalorder %s24, 1
      %p131 = por %p129, %p130
      %p133 = scmp.ne.s32.totalorder %s118, %s132
      %p134 = scmp.eq.s32.totalorder %s24, 0
      %p135 = por %p133, %p134
      %s137 = sadd.s32 %s136, 1
      %p140 = scmp.eq.s32.totalorder %s18, 1
      %p141 = scmp.ne.s32.totalorder %s136, %s138
      %p142 = scmp.eq.s32.totalorder %s18, 0
      %p143 = por %p141, %p142
      %p144 = scmp.ne.s32.totalorder %s136, %s138
      %p145 = scmp.eq.s32.totalorder %s23, 1
      %p146 = por %p144, %p145
      %p147 = scmp.ne.s32.totalorder %s138, %s139
      %p148 = scmp.eq.s32.totalorder %s23, 0
      %p149 = por %p147, %p148
      %p150 = scmp.ne.s32.totalorder %s138, %s139
      %p151 = scmp.eq.s32.totalorder %s24, 1
      %p152 = por %p150, %p151
      %p154 = scmp.ne.s32.totalorder %s139, %s153
      %p155 = scmp.eq.s32.totalorder %s24, 0
      %p156 = por %p154, %p155
      %s157 = ssub.s32 %s18, %s25
      %p158 = scmp.eq.s32.totalorder %s157, 0
      %s160 = sadd.s32 %s159, 1
      %s161 = scalar_select %p158, %s159, %s160
      %p164 = pneg %p158
      %p165 = scmp.eq.s32.totalorder %s18, 1
      %p166 = por %p164, %p165
      %p167 = scmp.ne.s32.totalorder %s159, %s162
      %p168 = scmp.eq.s32.totalorder %s18, 0
      %p169 = por %p167, %p168
      %p170 = scmp.ne.s32.totalorder %s159, %s162
      %p171 = scmp.eq.s32.totalorder %s23, 1
      %p172 = por %p170, %p171
      %p173 = scmp.ne.s32.totalorder %s162, %s163
      %p174 = scmp.eq.s32.totalorder %s23, 0
      %p175 = por %p173, %p174
      %p176 = scmp.ne.s32.totalorder %s162, %s163
      %p177 = scmp.eq.s32.totalorder %s24, 1
      %p178 = por %p176, %p177
      %p180 = scmp.ne.s32.totalorder %s163, %s179
      %p181 = scmp.eq.s32.totalorder %s24, 0
      %p182 = por %p180, %p181
      %p183 = scmp.le.s32.totalorder 1, %s18
      %p184 = scmp.lt.s32.totalorder %s18, 3
      %p185 = pnand %p183, %p184
      %p186 = pneg %p185
      // Predicated region
      $region9: #{tpu_custom_call.1} parent=5 // pred_check
        _
      $region10: #{tpu_custom_call.1} parent=5 // pred_check_branch
        %188 = sbr.rel (%p185) target = $region12
      $region11: #{tpu_custom_call.1} parent=5 // pred_region
        %s189 = ssub.s32 %s18, 1
        // Predicated region
        $region13: #{tpu_custom_call.1} parent=11 // pred_check
          %p190 = pneg %p65
        $region14: #{tpu_custom_call.1} parent=11 // pred_check_branch
          %192 = sbr.rel (%p190) target = $region16
        $region15: #{tpu_custom_call.1} parent=11 // pred_region
          _
        $region16: #{tpu_custom_call.1} parent=11 // pred_fallthru
          _
        // Predicated region
        $region17: #{tpu_custom_call.1} parent=11 // pred_check
          %p193 = pneg %p86
        $region18: #{tpu_custom_call.1} parent=11 // pred_check_branch
          %195 = sbr.rel (%p193) target = $region20
        $region19: #{tpu_custom_call.1} parent=11 // pred_region
          _
        $region20: #{tpu_custom_call.1} parent=11 // pred_fallthru
          _
        // Predicated region
        $region21: #{tpu_custom_call.1} parent=11 // pred_check
          %p196 = pneg %p107
        $region22: #{tpu_custom_call.1} parent=11 // pred_check_branch
          %198 = sbr.rel (%p196) target = $region24
        $region23: #{tpu_custom_call.1} parent=11 // pred_region
          _
        $region24: #{tpu_custom_call.1} parent=11 // pred_fallthru
          _
        // Predicated region
        $region25: #{tpu_custom_call.1} parent=11 // pred_check
          %p199 = pneg %p128
        $region26: #{tpu_custom_call.1} parent=11 // pred_check_branch
          %201 = sbr.rel (%p199) target = $region28
        $region27: #{tpu_custom_call.1} parent=11 // pred_region
          _
        $region28: #{tpu_custom_call.1} parent=11 // pred_fallthru
          _
        // Predicated region
        $region29: #{tpu_custom_call.1} parent=11 // pred_check
          %p202 = pneg %p149
        $region30: #{tpu_custom_call.1} parent=11 // pred_check_branch
          %204 = sbr.rel (%p202) target = $region32
        $region31: #{tpu_custom_call.1} parent=11 // pred_region
          _
        $region32: #{tpu_custom_call.1} parent=11 // pred_fallthru
          _
      $region12: #{tpu_custom_call.1} parent=5 // pred_fallthru
        _
      %p205 = scmp.lt.s32.totalorder %s18, 2
      // Predicated region
      $region33: #{tpu_custom_call.1} parent=5 // pred_check
        %p206 = pneg %p205
      $region34: #{tpu_custom_call.1} parent=5 // pred_check_branch
        %208 = sbr.rel (%p206) target = $region36
      $region35: #{tpu_custom_call.1} parent=5 // pred_region
        // Predicated region
        $region37: #{tpu_custom_call.1} parent=35 // pred_check
          %p209 = pneg %p38
        $region38: #{tpu_custom_call.1} parent=35 // pred_check_branch
          %211 = sbr.rel (%p209) target = $region40
        $region39: #{tpu_custom_call.1} parent=35 // pred_region
          %s212 = sand.u32 %s28, 1
          %s213 = scalar_lea.sflag [#allocation4], %s212
          %s214 = sand.u32 %s28, 1
          %s215 = smul.addr %s214, 128
          %s216 = scalar_lea.vmem [#allocation3], %s215
          %s217 = smul.u32 2, %s18
          %s219 = ssub.s32 2048, 2048
          %220 = vsyncadd %s213, %s219
          %s221 = smul.addr %s217, 8
          %s222 = smul.addr %s221, 128
          %s223 = scalar_lea.hbm %s0, %s222
          %s224 = sshll.u32 %s216, 4
          %s225 = int_to_ptr.vmem [resolvable:$true] %s224
          %230 = dma.hbm_to_vmem [thread:$0]  %s223, 2048, %s225, %s213, 256, 256, 16
        $region40: #{tpu_custom_call.1} parent=35 // pred_fallthru
          _
      $region36: #{tpu_custom_call.1} parent=5 // pred_fallthru
        _
      %p231 = scmp.le.s32.totalorder 1, %s18
      %p232 = scmp.lt.s32.totalorder %s18, 3
      %p233 = pnand %p231, %p232
      %p234 = pneg %p233
      // Predicated region
      $region41: #{tpu_custom_call.1} parent=5 // pred_check
        _
      $region42: #{tpu_custom_call.1} parent=5 // pred_check_branch
        %236 = sbr.rel (%p233) target = $region44
      $region43: #{tpu_custom_call.1} parent=5 // pred_region
        %s237 = ssub.s32 %s18, 1
        %s238 = sand.u32 %s31, 1
        %s239 = scalar_lea.sflag [#allocation4], %s238
        %s240 = sand.u32 %s31, 1
        %s241 = smul.addr %s240, 128
        %s242 = scalar_lea.vmem [#allocation3], %s241
        // Predicated region
        $region45: #{tpu_custom_call.1} parent=43 // pred_check
          %p243 = pneg %p44
        $region46: #{tpu_custom_call.1} parent=43 // pred_check_branch
          %245 = sbr.rel (%p243) target = $region48
        $region47: #{tpu_custom_call.1} parent=43 // pred_region
          %246 = dma.done %s239, 2048
        $region48: #{tpu_custom_call.1} parent=43 // pred_fallthru
          _
        %s247 = sand.u32 %s31, 1
        %s248 = scalar_lea.sflag [#allocation4], %s247
        %s249 = sand.u32 %s31, 1
        %s250 = smul.addr %s249, 128
        %s251 = scalar_lea.vmem [#allocation3], %s250
        %p252 = pneg %p44
        %p253 = pneg %p41
        %p254 = pneg %p65
        %p255 = pneg %p62
        %p256 = pneg %p86
        %p257 = pneg %p83
        %p258 = pneg %p107
        %p259 = pneg %p104
        %p260 = pneg %p128
        %p261 = pneg %p125
        %p262 = pneg %p149
        %p263 = pneg %p146
        %p264 = pneg %p175
        %p265 = pneg %p172
        %s266 = sand.u32 %s162, 1
        %s267 = scalar_lea.sflag [#allocation5], %s266
        %s268 = sand.u32 %s162, 1
        %s269 = smul.addr %s268, 128
        %s270 = scalar_lea.vmem [#allocation6], %s269
        %s271 = smul.u32 2, %s23
        %s272 = smul.u32 2, %s23
        %v273 = vld [vmem:[%s242] sm:$0xff]
        %v274 = vld [vmem:[%s242 + $0x8] sm:$0xff]
        %v275 = vld [vmem:[%s242 + $0x10] sm:$0xff]
        %v276 = vld [vmem:[%s242 + $0x18] sm:$0xff]
        %v277 = vld [vmem:[%s242 + $0x20] sm:$0xff]
        %v278 = vld [vmem:[%s242 + $0x28] sm:$0xff]
        %v279 = vld [vmem:[%s242 + $0x30] sm:$0xff]
        %v280 = vld [vmem:[%s242 + $0x38] sm:$0xff]
        %v281 = vadd.f32 %v273, %v274
        %282 = vadd.xlane.f32.xlu0 %v281
        %v283 = vpop.xlane.xlu0 %282
        %v284 = vadd.f32 %v275, %v276
        %285 = vadd.xlane.f32.xlu0 %v284
        %v286 = vpop.xlane.xlu0 %285
        %v287 = vadd.f32 %v277, %v278
        %288 = vadd.xlane.f32.xlu0 %v287
        %v289 = vpop.xlane.xlu0 %288
        %v290 = vadd.f32 %v279, %v280
        %291 = vadd.xlane.f32.xlu0 %v290
        %v292 = vpop.xlane.xlu0 %291
        %v293 = vmul.f32 %v283, 0.00390625
        %v294 = vmul.f32 %v286, 0.00390625
        %v295 = vmul.f32 %v289, 0.00390625
        %v296 = vmul.f32 %v292, 0.00390625
        %vm297 = vcmask 7168
        %298 = vst.msk [vmem:[#allocation2] sm:$0xff] %vm297, %v293
        %299 = vst.msk [vmem:[#allocation2 + $0x8] sm:$0xff] %vm297, %v294
        %300 = vst.msk [vmem:[#allocation2 + $0x10] sm:$0xff] %vm297, %v295
        %301 = vst.msk [vmem:[#allocation2 + $0x18] sm:$0xff] %vm297, %v296
        %s302 = scalar_lea.vmem %s242, 64 [#allocation3]
        %v303 = vld [vmem:[%s302] sm:$0xff]
        %v304 = vld [vmem:[%s302 + $0x8] sm:$0xff]
        %v305 = vld [vmem:[%s302 + $0x10] sm:$0xff]
        %v306 = vld [vmem:[%s302 + $0x18] sm:$0xff]
        %v307 = vld [vmem:[%s302 + $0x20] sm:$0xff]
        %v308 = vld [vmem:[%s302 + $0x28] sm:$0xff]
        %v309 = vld [vmem:[%s302 + $0x30] sm:$0xff]
        %v310 = vld [vmem:[%s302 + $0x38] sm:$0xff]
        %v311 = vadd.f32 %v303, %v304
        %312 = vadd.xlane.f32.xlu0 %v311
        %v313 = vpop.xlane.xlu0 %312
        %v314 = vadd.f32 %v305, %v306
        %315 = vadd.xlane.f32.xlu0 %v314
        %v316 = vpop.xlane.xlu0 %315
        %v317 = vadd.f32 %v307, %v308
        %318 = vadd.xlane.f32.xlu0 %v317
        %v319 = vpop.xlane.xlu0 %318
        %v320 = vadd.f32 %v309, %v310
        %321 = vadd.xlane.f32.xlu0 %v320
        %v322 = vpop.xlane.xlu0 %321
        %v323 = vmul.f32 %v313, 0.00390625
        %v324 = vmul.f32 %v316, 0.00390625
        %v325 = vmul.f32 %v319, 0.00390625
        %v326 = vmul.f32 %v322, 0.00390625
        %vm327 = vcmask 15368
        %328 = vst.msk [vmem:[#allocation2] sm:$0xff] %vm327, %v323
        %329 = vst.msk [vmem:[#allocation2 + $0x8] sm:$0xff] %vm327, %v324
        %330 = vst.msk [vmem:[#allocation2 + $0x10] sm:$0xff] %vm327, %v325
        %331 = vst.msk [vmem:[#allocation2 + $0x18] sm:$0xff] %vm327, %v326
        %v332 = vld [vmem:[#allocation2] sm:$0xff]
        %v333 = vld [vmem:[#allocation2 + $0x8] sm:$0xff]
        %v334 = vld [vmem:[#allocation2 + $0x10] sm:$0xff]
        %v335 = vld [vmem:[#allocation2 + $0x18] sm:$0xff]
        %v336 = vld [vmem:[%s1] sm:$0x3]
        %v337 = vld [vmem:[%s2] sm:$0x3]
        %339 = vset.pattern.permute.xlu0 0
        %340 = vperm.xlu0 %339, %v337
        %v341 = vpop.permute.xlu0 %340
        %vm343 = vcmask 261120
        %v345 = vsel %vm343, %v336, 0
        %347 = vmatprep.subr.mxu0 0.0
        %348 = vmatpush1.msra.mxu0 0.0
        %349 = vmatprep.subr.mxu0 0.0
        %350 = vmatpush1.msra.mxu0 0.0
        %351 = vmatprep.subr.mxu0 0.0
        %352 = vmatpush1.msra.mxu0 0.0
        %353 = vmatprep.subr.mxu0 0.0
        %354 = vmatpush1.msra.mxu0 0.0
        %355 = vmatprep.subr.mxu0 0.0
        %356 = vmatpush1.msra.mxu0 0.0
        %357 = vmatprep.subr.mxu0 0.0
        %358 = vmatpush1.msra.mxu0 0.0
        %359 = vmatprep.subr.mxu0 0.0
        %360 = vmatpush1.msra.mxu0 0.0
        %361 = vmatprep.subr.mxu0 0.0
        %362 = vmatpush1.msra.mxu0 0.0
        %363 = vmatprep.subr.mxu0 0.0
        %364 = vmatpush1.msra.mxu0 0.0
        %365 = vmatprep.subr.mxu0 0.0
        %366 = vmatpush1.msra.mxu0 0.0
        %367 = vmatprep.subr.mxu0 0.0
        %368 = vmatpush1.msra.mxu0 0.0
        %369 = vmatprep.subr.mxu0 0.0
        %370 = vmatpush1.msra.mxu0 0.0
        %371 = vmatprep.subr.mxu0 0.0
        %372 = vmatpush1.msra.mxu0 %v335
        %373 = vmatprep.subr.mxu0 0.0
        %374 = vmatpush1.msra.mxu0 %v334
        %375 = vmatprep.subr.mxu0 0.0
        %376 = vmatpush1.msra.mxu0 %v333
        %377 = vmatprep.subr.mxu0 0.0
        %378 = vmatpush1.msra.mxu0 %v332
        %379 = vmatprep.subr.mxu0 0.0
        %380 = vmatpush2.msra.mxu0 0.0
        %381 = vmatprep.subr.mxu0 0.0
        %382 = vmatpush2.msra.mxu0 0.0
        %383 = vmatprep.subr.mxu0 0.0
        %384 = vmatpush2.msra.mxu0 0.0
        %385 = vmatprep.subr.mxu0 0.0
        %386 = vmatpush2.msra.mxu0 0.0
        %387 = vmatprep.subr.mxu0 0.0
        %388 = vmatpush2.msra.mxu0 0.0
        %389 = vmatprep.subr.mxu0 0.0
        %390 = vmatpush2.msra.mxu0 0.0
        %391 = vmatprep.subr.mxu0 0.0
        %392 = vmatpush2.msra.mxu0 0.0
        %393 = vmatprep.subr.mxu0 0.0
        %394 = vmatpush2.msra.mxu0 0.0
        %395 = vmatprep.subr.mxu0 0.0
        %396 = vmatpush2.msra.mxu0 0.0
        %397 = vmatprep.subr.mxu0 0.0
        %398 = vmatpush2.msra.mxu0 0.0
        %399 = vmatprep.subr.mxu0 0.0
        %400 = vmatpush2.msra.mxu0 0.0
        %401 = vmatprep.subr.mxu0 0.0
        %402 = vmatpush2.msra.mxu0 0.0
        %403 = vmatprep.subr.mxu0 0.0
        %404 = vmatpush2.msra.mxu0 0.0
        %405 = vmatprep.subr.mxu0 0.0
        %406 = vmatpush2.msra.mxu0 0.0
        %407 = vmatprep.subr.mxu0 0.0
        %408 = vmatpush2.msra.mxu0 0.0
        %409 = vmatprep.subr.mxu0 0.0
        %410 = vmatpush2.msra.mxu0 0.0
        %411 = vmatprep.mubr.f32.mxu0 0.0
        %412 = vmatmul.mubr.f32.gmra.mxu0 %v345
        %v413 = vpop.f32.mrf.mxu0
        %v414 = vadd.f32 %v341, %v413
        %v415 = vpop.f32.mrf.mxu0
        %416 = vdwg.mxu0
        %v417 = vmax.f32 %v414, 0.0
        %v418 = vld [vmem:[%s3] sm:$0xff]
        %v419 = vld [vmem:[%s3 + $0x8] sm:$0xff]
        %v420 = vld [vmem:[%s3 + $0x10] sm:$0xff]
        %v421 = vld [vmem:[%s3 + $0x18] sm:$0xff]
        %v422 = vld [vmem:[%s4] sm:$0xff]
        %v423 = vld [vmem:[%s4 + $0x8] sm:$0xff]
        %v424 = vld [vmem:[%s4 + $0x10] sm:$0xff]
        %v425 = vld [vmem:[%s4 + $0x18] sm:$0xff]
        %427 = vset.pattern.permute.xlu0 0
        %428 = vperm.xlu0 %427, %v422
        %v429 = vpop.permute.xlu0 %428
        %432 = vset.pattern.permute.xlu0 0
        %433 = vperm.xlu0 %432, %v423
        %v434 = vpop.permute.xlu0 %433
        %437 = vset.pattern.permute.xlu0 0
        %438 = vperm.xlu0 %437, %v424
        %v439 = vpop.permute.xlu0 %438
        %442 = vset.pattern.permute.xlu0 0
        %443 = vperm.xlu0 %442, %v425
        %v444 = vpop.permute.xlu0 %443
        %vm446 = vcmask 15360
        %v448 = vsel %vm446, %v418, 0
        %v451 = vsel %vm446, %v419, 0
        %v454 = vsel %vm446, %v420, 0
        %v457 = vsel %vm446, %v421, 0
        %vm459 = vcmask 1041408
        %v461 = vsel %vm459, %v417, 0
        %463 = vmatprep.subr.mxu0 0.0
        %464 = vmatpush1.msra.mxu0 0.0
        %465 = vmatprep.subr.mxu0 0.0
        %466 = vmatpush1.msra.mxu0 0.0
        %467 = vmatprep.subr.mxu0 0.0
        %468 = vmatpush1.msra.mxu0 0.0
        %469 = vmatprep.subr.mxu0 0.0
        %470 = vmatpush1.msra.mxu0 0.0
        %471 = vmatprep.subr.mxu0 0.0
        %472 = vmatpush1.msra.mxu0 0.0
        %473 = vmatprep.subr.mxu0 0.0
        %474 = vmatpush1.msra.mxu0 0.0
        %475 = vmatprep.subr.mxu0 0.0
        %476 = vmatpush1.msra.mxu0 0.0
        %477 = vmatprep.subr.mxu0 0.0
        %478 = vmatpush1.msra.mxu0 0.0
        %479 = vmatprep.subr.mxu0 0.0
        %480 = vmatpush1.msra.mxu0 0.0
        %481 = vmatprep.subr.mxu0 0.0
        %482 = vmatpush1.msra.mxu0 0.0
        %483 = vmatprep.subr.mxu0 0.0
        %484 = vmatpush1.msra.mxu0 0.0
        %485 = vmatprep.subr.mxu0 0.0
        %486 = vmatpush1.msra.mxu0 0.0
        %487 = vmatprep.subr.mxu0 0.0
        %488 = vmatpush1.msra.mxu0 0.0
        %489 = vmatprep.subr.mxu0 0.0
        %490 = vmatpush1.msra.mxu0 0.0
        %491 = vmatprep.subr.mxu0 0.0
        %492 = vmatpush1.msra.mxu0 0.0
        %493 = vmatprep.subr.mxu0 0.0
        %494 = vmatpush1.msra.mxu0 %v461
        %495 = vmatprep.subr.mxu0 0.0
        %496 = vmatpush2.msra.mxu0 0.0
        %497 = vmatprep.subr.mxu0 0.0
        %498 = vmatpush2.msra.mxu0 0.0
        %499 = vmatprep.subr.mxu0 0.0
        %500 = vmatpush2.msra.mxu0 0.0
        %501 = vmatprep.subr.mxu0 0.0
        %502 = vmatpush2.msra.mxu0 0.0
        %503 = vmatprep.subr.mxu0 0.0
        %504 = vmatpush2.msra.mxu0 0.0
        %505 = vmatprep.subr.mxu0 0.0
        %506 = vmatpush2.msra.mxu0 0.0
        %507 = vmatprep.subr.mxu0 0.0
        %508 = vmatpush2.msra.mxu0 0.0
        %509 = vmatprep.subr.mxu0 0.0
        %510 = vmatpush2.msra.mxu0 0.0
        %511 = vmatprep.subr.mxu0 0.0
        %512 = vmatpush2.msra.mxu0 0.0
        %513 = vmatprep.subr.mxu0 0.0
        %514 = vmatpush2.msra.mxu0 0.0
        %515 = vmatprep.subr.mxu0 0.0
        %516 = vmatpush2.msra.mxu0 0.0
        %517 = vmatprep.subr.mxu0 0.0
        %518 = vmatpush2.msra.mxu0 0.0
        %519 = vmatprep.subr.mxu0 0.0
        %520 = vmatpush2.msra.mxu0 0.0
        %521 = vmatprep.subr.mxu0 0.0
        %522 = vmatpush2.msra.mxu0 0.0
        %523 = vmatprep.subr.mxu0 0.0
        %524 = vmatpush2.msra.mxu0 0.0
        %525 = vmatprep.subr.mxu0 0.0
        %526 = vmatpush2.msra.mxu0 0.0
        %527 = vmatprep.mubr.f32.mxu0 0.0
        %528 = vmatmul.mubr.f32.gmra.mxu0 %v448
        %v529 = vpop.f32.mrf.mxu0
        %v530 = vadd.f32 %v429, %v529
        %v531 = vpop.f32.mrf.mxu0
        %532 = vmatprep.mubr.f32.mxu0 0.0
        %533 = vmatmul.mubr.f32.gmra.mxu0 %v451
        %v534 = vpop.f32.mrf.mxu0
        %v535 = vadd.f32 %v434, %v534
        %v536 = vpop.f32.mrf.mxu0
        %537 = vmatprep.mubr.f32.mxu0 0.0
        %538 = vmatmul.mubr.f32.gmra.mxu0 %v454
        %v539 = vpop.f32.mrf.mxu0
        %v540 = vadd.f32 %v439, %v539
        %v541 = vpop.f32.mrf.mxu0
        %542 = vmatprep.mubr.f32.mxu0 0.0
        %543 = vmatmul.mubr.f32.gmra.mxu0 %v457
        %v544 = vpop.f32.mrf.mxu0
        %v545 = vadd.f32 %v444, %v544
        %v546 = vpop.f32.mrf.mxu0
        %547 = vdwg.mxu0
        %v548 = vxor.u32 %v530, 2147483648
        %v549 = vxor.u32 %v535, 2147483648
        %v550 = vxor.u32 %v540, 2147483648
        %v551 = vxor.u32 %v545, 2147483648
        %v552 = vmul.f32 %v548, 1.442695
        %v553 = vpow.pop %v552
        %v554 = vmul.f32 %v549, 1.442695
        %v555 = vpow.pop %v554
        %v556 = vmul.f32 %v550, 1.442695
        %v557 = vpow.pop %v556
        %v558 = vmul.f32 %v551, 1.442695
        %v559 = vpow.pop %v558
        %v560 = vadd.f32 %v553, 1.0
        %v561 = vadd.f32 %v555, 1.0
        %v562 = vadd.f32 %v557, 1.0
        %v563 = vadd.f32 %v559, 1.0
        %v564 = vrcp.pop %v560
        %v565 = vmul.f32 1.0, %v564
        %v566 = vrcp.pop %v561
        %v567 = vmul.f32 1.0, %v566
        %v568 = vrcp.pop %v562
        %v569 = vmul.f32 1.0, %v568
        %v570 = vrcp.pop %v563
        %v571 = vmul.f32 1.0, %v570
        %v572 = vld [vmem:[%s242] sm:$0xff]
        %v573 = vld [vmem:[%s242 + $0x8] sm:$0xff]
        %v574 = vld [vmem:[%s242 + $0x10] sm:$0xff]
        %v575 = vld [vmem:[%s242 + $0x18] sm:$0xff]
        %v576 = vld [vmem:[%s242 + $0x20] sm:$0xff]
        %v577 = vld [vmem:[%s242 + $0x28] sm:$0xff]
        %v578 = vld [vmem:[%s242 + $0x30] sm:$0xff]
        %v579 = vld [vmem:[%s242 + $0x38] sm:$0xff]
        %v580 = vld [vmem:[%s5] sm:$0x1]
        %v582 = vsel %vm343, %v580, 0
        %584 = vmatprep.subr.mxu0 0.0
        %585 = vmatpush1.msra.mxu0 0.0
        %586 = vmatprep.subr.mxu0 0.0
        %587 = vmatpush1.msra.mxu0 0.0
        %588 = vmatprep.subr.mxu0 0.0
        %589 = vmatpush1.msra.mxu0 0.0
        %590 = vmatprep.subr.mxu0 0.0
        %591 = vmatpush1.msra.mxu0 0.0
        %592 = vmatprep.subr.mxu0 0.0
        %593 = vmatpush1.msra.mxu0 0.0
        %594 = vmatprep.subr.mxu0 0.0
        %595 = vmatpush1.msra.mxu0 0.0
        %596 = vmatprep.subr.mxu0 0.0
        %597 = vmatpush1.msra.mxu0 0.0
        %598 = vmatprep.subr.mxu0 0.0
        %599 = vmatpush1.msra.mxu0 0.0
        %600 = vmatprep.subr.mxu0 0.0
        %601 = vmatpush1.msra.mxu0 0.0
        %602 = vmatprep.subr.mxu0 0.0
        %603 = vmatpush1.msra.mxu0 0.0
        %604 = vmatprep.subr.mxu0 0.0
        %605 = vmatpush1.msra.mxu0 0.0
        %606 = vmatprep.subr.mxu0 0.0
        %607 = vmatpush1.msra.mxu0 0.0
        %608 = vmatprep.subr.mxu0 %v579
        %609 = vmatpush1.msra.mxu0 %v578
        %610 = vmatprep.subr.mxu0 %v577
        %611 = vmatpush1.msra.mxu0 %v576
        %612 = vmatprep.subr.mxu0 %v575
        %613 = vmatpush1.msra.mxu0 %v574
        %614 = vmatprep.subr.mxu0 %v573
        %615 = vmatpush1.msra.mxu0 %v572
        %616 = vmatprep.subr.mxu0 0.0
        %617 = vmatpush2.msra.mxu0 0.0
        %618 = vmatprep.subr.mxu0 0.0
        %619 = vmatpush2.msra.mxu0 0.0
        %620 = vmatprep.subr.mxu0 0.0
        %621 = vmatpush2.msra.mxu0 0.0
        %622 = vmatprep.subr.mxu0 0.0
        %623 = vmatpush2.msra.mxu0 0.0
        %624 = vmatprep.subr.mxu0 0.0
        %625 = vmatpush2.msra.mxu0 0.0
        %626 = vmatprep.subr.mxu0 0.0
        %627 = vmatpush2.msra.mxu0 0.0
        %628 = vmatprep.subr.mxu0 0.0
        %629 = vmatpush2.msra.mxu0 0.0
        %630 = vmatprep.subr.mxu0 0.0
        %631 = vmatpush2.msra.mxu0 0.0
        %632 = vmatprep.subr.mxu0 0.0
        %633 = vmatpush2.msra.mxu0 0.0
        %634 = vmatprep.subr.mxu0 0.0
        %635 = vmatpush2.msra.mxu0 0.0
        %636 = vmatprep.subr.mxu0 0.0
        %637 = vmatpush2.msra.mxu0 0.0
        %638 = vmatprep.subr.mxu0 0.0
        %639 = vmatpush2.msra.mxu0 0.0
        %640 = vmatprep.subr.mxu0 0.0
        %641 = vmatpush2.msra.mxu0 0.0
        %642 = vmatprep.subr.mxu0 0.0
        %643 = vmatpush2.msra.mxu0 0.0
        %644 = vmatprep.subr.mxu0 0.0
        %645 = vmatpush2.msra.mxu0 0.0
        %646 = vmatprep.subr.mxu0 0.0
        %647 = vmatpush2.msra.mxu0 0.0
        %648 = vmatprep.mubr.f32.mxu0 0.0
        %649 = vmatmul.mubr.f32.gmra.mxu0 %v582
        %v650 = vpop.f32.mrf.mxu0
        %v651 = vadd.f32 0.0, %v650
        %v652 = vpop.f32.mrf.mxu0
        %v653 = vadd.f32 0.0, %v652
        %654 = vdwg.mxu0
        %v655 = vxor.u32 %v651, 2147483648
        %v656 = vxor.u32 %v653, 2147483648
        %v657 = vmul.f32 %v655, 1.442695
        %v658 = vpow.pop %v657
        %v659 = vmul.f32 %v656, 1.442695
        %v660 = vpow.pop %v659
        %v661 = vadd.f32 %v658, 1.0
        %v662 = vadd.f32 %v660, 1.0
        %v663 = vrcp.pop %v661
        %v664 = vmul.f32 1.0, %v663
        %v665 = vrcp.pop %v662
        %v666 = vmul.f32 1.0, %v665
        %668 = vset.pattern.permute.xlu0 0
        %669 = vperm.xlu0 %668, %v565
        %v670 = vpop.permute.xlu0 %669
        %673 = vset.pattern.permute.xlu0 0
        %674 = vperm.xlu0 %673, %v567
        %v675 = vpop.permute.xlu0 %674
        %678 = vset.pattern.permute.xlu0 0
        %679 = vperm.xlu0 %678, %v569
        %v680 = vpop.permute.xlu0 %679
        %683 = vset.pattern.permute.xlu0 0
        %684 = vperm.xlu0 %683, %v571
        %v685 = vpop.permute.xlu0 %684
        %v687 = vmul.f32 %v572, %v670
        %v688 = vmul.f32 %v573, %v670
        %v689 = vmul.f32 %v574, %v675
        %v690 = vmul.f32 %v575, %v675
        %v691 = vmul.f32 %v576, %v680
        %v692 = vmul.f32 %v577, %v680
        %v693 = vmul.f32 %v578, %v685
        %v694 = vmul.f32 %v579, %v685
        %v695 = vlaneseq
        %v696 = vshrl.u32 %v695, 7
        %v697 = vsub.s32 0, %v696
        %v698 = vrot.slane %v664, %v697
        %v699 = vlaneseq
        %v700 = vshrl.u32 %v699, 7
        %v701 = vsub.s32 0, %v700
        %v702 = vrot.slane %v666, %v701
        %v703 = vmul.f32 %v687, %v698
        %v704 = vmul.f32 %v688, %v702
        %v705 = vmul.f32 %v689, %v698
        %v706 = vmul.f32 %v690, %v702
        %v707 = vmul.f32 %v691, %v698
        %v708 = vmul.f32 %v692, %v702
        %v709 = vmul.f32 %v693, %v698
        %v710 = vmul.f32 %v694, %v702
        %711 = vst [vmem:[%s270] sm:$0xff] %v703
        %712 = vst [vmem:[%s270 + $0x8] sm:$0xff] %v704
        %713 = vst [vmem:[%s270 + $0x10] sm:$0xff] %v705
        %714 = vst [vmem:[%s270 + $0x18] sm:$0xff] %v706
        %715 = vst [vmem:[%s270 + $0x20] sm:$0xff] %v707
        %716 = vst [vmem:[%s270 + $0x28] sm:$0xff] %v708
        %717 = vst [vmem:[%s270 + $0x30] sm:$0xff] %v709
        %718 = vst [vmem:[%s270 + $0x38] sm:$0xff] %v710
        %v719 = vld [vmem:[%s302] sm:$0xff]
        %v720 = vld [vmem:[%s302 + $0x8] sm:$0xff]
        %v721 = vld [vmem:[%s302 + $0x10] sm:$0xff]
        %v722 = vld [vmem:[%s302 + $0x18] sm:$0xff]
        %v723 = vld [vmem:[%s302 + $0x20] sm:$0xff]
        %v724 = vld [vmem:[%s302 + $0x28] sm:$0xff]
        %v725 = vld [vmem:[%s302 + $0x30] sm:$0xff]
        %v726 = vld [vmem:[%s302 + $0x38] sm:$0xff]
        %v727 = vld [vmem:[%s5] sm:$0x1]
        %v729 = vsel %vm343, %v727, 0
        %731 = vmatprep.subr.mxu0 0.0
        %732 = vmatpush1.msra.mxu0 0.0
        %733 = vmatprep.subr.mxu0 0.0
        %734 = vmatpush1.msra.mxu0 0.0
        %735 = vmatprep.subr.mxu0 0.0
        %736 = vmatpush1.msra.mxu0 0.0
        %737 = vmatprep.subr.mxu0 0.0
        %738 = vmatpush1.msra.mxu0 0.0
        %739 = vmatprep.subr.mxu0 0.0
        %740 = vmatpush1.msra.mxu0 0.0
        %741 = vmatprep.subr.mxu0 0.0
        %742 = vmatpush1.msra.mxu0 0.0
        %743 = vmatprep.subr.mxu0 0.0
        %744 = vmatpush1.msra.mxu0 0.0
        %745 = vmatprep.subr.mxu0 0.0
        %746 = vmatpush1.msra.mxu0 0.0
        %747 = vmatprep.subr.mxu0 0.0
        %748 = vmatpush1.msra.mxu0 0.0
        %749 = vmatprep.subr.mxu0 0.0
        %750 = vmatpush1.msra.mxu0 0.0
        %751 = vmatprep.subr.mxu0 0.0
        %752 = vmatpush1.msra.mxu0 0.0
        %753 = vmatprep.subr.mxu0 0.0
        %754 = vmatpush1.msra.mxu0 0.0
        %755 = vmatprep.subr.mxu0 %v726
        %756 = vmatpush1.msra.mxu0 %v725
        %757 = vmatprep.subr.mxu0 %v724
        %758 = vmatpush1.msra.mxu0 %v723
        %759 = vmatprep.subr.mxu0 %v722
        %760 = vmatpush1.msra.mxu0 %v721
        %761 = vmatprep.subr.mxu0 %v720
        %762 = vmatpush1.msra.mxu0 %v719
        %763 = vmatprep.subr.mxu0 0.0
        %764 = vmatpush2.msra.mxu0 0.0
        %765 = vmatprep.subr.mxu0 0.0
        %766 = vmatpush2.msra.mxu0 0.0
        %767 = vmatprep.subr.mxu0 0.0
        %768 = vmatpush2.msra.mxu0 0.0
        %769 = vmatprep.subr.mxu0 0.0
        %770 = vmatpush2.msra.mxu0 0.0
        %771 = vmatprep.subr.mxu0 0.0
        %772 = vmatpush2.msra.mxu0 0.0
        %773 = vmatprep.subr.mxu0 0.0
        %774 = vmatpush2.msra.mxu0 0.0
        %775 = vmatprep.subr.mxu0 0.0
        %776 = vmatpush2.msra.mxu0 0.0
        %777 = vmatprep.subr.mxu0 0.0
        %778 = vmatpush2.msra.mxu0 0.0
        %779 = vmatprep.subr.mxu0 0.0
        %780 = vmatpush2.msra.mxu0 0.0
        %781 = vmatprep.subr.mxu0 0.0
        %782 = vmatpush2.msra.mxu0 0.0
        %783 = vmatprep.subr.mxu0 0.0
        %784 = vmatpush2.msra.mxu0 0.0
        %785 = vmatprep.subr.mxu0 0.0
        %786 = vmatpush2.msra.mxu0 0.0
        %787 = vmatprep.subr.mxu0 0.0
        %788 = vmatpush2.msra.mxu0 0.0
        %789 = vmatprep.subr.mxu0 0.0
        %790 = vmatpush2.msra.mxu0 0.0
        %791 = vmatprep.subr.mxu0 0.0
        %792 = vmatpush2.msra.mxu0 0.0
        %793 = vmatprep.subr.mxu0 0.0
        %794 = vmatpush2.msra.mxu0 0.0
        %795 = vmatprep.mubr.f32.mxu0 0.0
        %796 = vmatmul.mubr.f32.gmra.mxu0 %v729
        %v797 = vpop.f32.mrf.mxu0
        %v798 = vadd.f32 0.0, %v797
        %v799 = vpop.f32.mrf.mxu0
        %v800 = vadd.f32 0.0, %v799
        %801 = vdwg.mxu0
        %v802 = vxor.u32 %v798, 2147483648
        %v803 = vxor.u32 %v800, 2147483648
        %v804 = vmul.f32 %v802, 1.442695
        %v805 = vpow.pop %v804
        %v806 = vmul.f32 %v803, 1.442695
        %v807 = vpow.pop %v806
        %v808 = vadd.f32 %v805, 1.0
        %v809 = vadd.f32 %v807, 1.0
        %v810 = vrcp.pop %v808
        %v811 = vmul.f32 1.0, %v810
        %v812 = vrcp.pop %v809
        %v813 = vmul.f32 1.0, %v812
        %814 = vset.pattern.permute.xlu0 1
        %815 = vperm.xlu0 %814, %v565
        %v816 = vpop.permute.xlu0 %815
        %818 = vset.pattern.permute.xlu0 1
        %819 = vperm.xlu0 %818, %v567
        %v820 = vpop.permute.xlu0 %819
        %822 = vset.pattern.permute.xlu0 1
        %823 = vperm.xlu0 %822, %v569
        %v824 = vpop.permute.xlu0 %823
        %826 = vset.pattern.permute.xlu0 1
        %827 = vperm.xlu0 %826, %v571
        %v828 = vpop.permute.xlu0 %827
        %v830 = vmul.f32 %v719, %v816
        %v831 = vmul.f32 %v720, %v816
        %v832 = vmul.f32 %v721, %v820
        %v833 = vmul.f32 %v722, %v820
        %v834 = vmul.f32 %v723, %v824
        %v835 = vmul.f32 %v724, %v824
        %v836 = vmul.f32 %v725, %v828
        %v837 = vmul.f32 %v726, %v828
        %v838 = vlaneseq
        %v839 = vshrl.u32 %v838, 7
        %v840 = vsub.s32 0, %v839
        %v841 = vrot.slane %v811, %v840
        %v842 = vlaneseq
        %v843 = vshrl.u32 %v842, 7
        %v844 = vsub.s32 0, %v843
        %v845 = vrot.slane %v813, %v844
        %v846 = vmul.f32 %v830, %v841
        %v847 = vmul.f32 %v831, %v845
        %v848 = vmul.f32 %v832, %v841
        %v849 = vmul.f32 %v833, %v845
        %v850 = vmul.f32 %v834, %v841
        %v851 = vmul.f32 %v835, %v845
        %v852 = vmul.f32 %v836, %v841
        %v853 = vmul.f32 %v837, %v845
        %s854 = scalar_lea.vmem %s270, 64 [#allocation6]
        %855 = vst [vmem:[%s854] sm:$0xff] %v846
        %856 = vst [vmem:[%s854 + $0x8] sm:$0xff] %v847
        %857 = vst [vmem:[%s854 + $0x10] sm:$0xff] %v848
        %858 = vst [vmem:[%s854 + $0x18] sm:$0xff] %v849
        %859 = vst [vmem:[%s854 + $0x20] sm:$0xff] %v850
        %860 = vst [vmem:[%s854 + $0x28] sm:$0xff] %v851
        %861 = vst [vmem:[%s854 + $0x30] sm:$0xff] %v852
        %862 = vst [vmem:[%s854 + $0x38] sm:$0xff] %v853
        %s863 = sand.u32 %s162, 1
        %s864 = scalar_lea.sflag [#allocation5], %s863
        %s865 = sand.u32 %s162, 1
        %s866 = smul.addr %s865, 128
        %s867 = scalar_lea.vmem [#allocation6], %s866
        // Predicated region
        $region49: #{tpu_custom_call.1} parent=43 // pred_check
          %p868 = pneg %p172
        $region50: #{tpu_custom_call.1} parent=43 // pred_check_branch
          %870 = sbr.rel (%p868) target = $region52
        $region51: #{tpu_custom_call.1} parent=43 // pred_region
          %s871 = smul.u32 2, %s23
          %s873 = ssub.s32 2048, 2048
          %874 = vsyncadd %s864, %s873
          %s875 = smul.addr %s871, 8
          %s876 = smul.addr %s875, 128
          %s877 = scalar_lea.hbm %s6, %s876
          %s878 = sshll.u32 %s867, 4
          %s879 = int_to_ptr.vmem [resolvable:$true] %s878
          %884 = dma.vmem_to_hbm [thread:$0]  %s879, 2048, %s877, %s864, 256, 256, 16
        $region52: #{tpu_custom_call.1} parent=43 // pred_fallthru
          _
      $region44: #{tpu_custom_call.1} parent=5 // pred_fallthru
        _
      %p885 = scmp.le.s32.totalorder 2, %s18
      // Predicated region
      $region53: #{tpu_custom_call.1} parent=5 // pred_check
        %p886 = pneg %p885
      $region54: #{tpu_custom_call.1} parent=5 // pred_check_branch
        %888 = sbr.rel (%p886) target = $region56
      $region55: #{tpu_custom_call.1} parent=5 // pred_region
        %s889 = ssub.s32 %s18, 2
        // Predicated region
        $region57: #{tpu_custom_call.1} parent=55 // pred_check
          %p890 = pneg %p178
        $region58: #{tpu_custom_call.1} parent=55 // pred_check_branch
          %892 = sbr.rel (%p890) target = $region60
        $region59: #{tpu_custom_call.1} parent=55 // pred_region
          %s893 = sand.u32 %s163, 1
          %s894 = scalar_lea.sflag [#allocation5], %s893
          %s895 = sand.u32 %s163, 1
          %s896 = smul.addr %s895, 128
          %s897 = scalar_lea.vmem [#allocation6], %s896
          %898 = dma.done %s894, 2048
        $region60: #{tpu_custom_call.1} parent=55 // pred_fallthru
          _
      $region56: #{tpu_custom_call.1} parent=5 // pred_fallthru
        _
    $region6: #{tpu_custom_call.1} parent=1 // loop_footer
      %s22 = sadd.s32 1, %s18
    $region7: #{tpu_custom_call.1} parent=1 // loop_footer_branch
      %17 = sbr.rel target = $region3
    $region8: #{tpu_custom_call.1} parent=1 // loop_exit
      _
    %899 = vsyncpa [#allocation4], 1
    %s900 = scalar_lea.sflag [#allocation4], 1
    %901 = vsyncpa %s900, 1
    %902 = vsyncpa [#allocation5], 1
    %s903 = scalar_lea.sflag [#allocation5], 1
    %904 = vsyncpa %s903, 1

</llo_original>
